<compile_context>
chip_gen: v5e
topology: v5e:2x2
jax: 0.10.0
libtpu: 0.0.40
codegen_flags: <defaults>
</compile_context>

<pallas_src>
import jax
import jax.numpy as jnp
from jax.experimental import pallas as pl
from jax.experimental.pallas import tpu as pltpu


def _round_up(x, m):
    return ((x + m - 1) // m) * m


def _emission_mean_kernel(ct_ref, x_ref, o_ref):
    # X tile: (TM, L) @ C^T: (L, O) -> (TM, O).
    # LHS contracts over its last (lane) axis, so Mosaic feeds the MXU without
    # transposing the large X tile; the only transposed operand is the tiny
    # (O, L) C, done once in the wrapper.
    o_ref[...] = jnp.dot(
        x_ref[...], ct_ref[...], preferred_element_type=jnp.float32
    ).astype(o_ref.dtype)


def emission_mean(latents_last, C, *, tm_max=8192, min_pallas_rows=2048,
                  force_pallas=False):
    """latents_last: (batch, particles, dim_latents); C: (dim_obs, dim_latents)."""
    batch, particles, dim_latents = latents_last.shape
    dim_obs, dl = C.shape
    assert dl == dim_latents
    M = batch * particles

    if M < min_pallas_rows and not force_pallas:
        # Small-M fast path: total data is a few KB; a fused XLA einsum is
        # strictly faster than a pallas_call dispatch on every generation.
        return jnp.einsum("ol,bpl->bpo", C, latents_last)

    x = latents_last.reshape(M, dim_latents)   # contiguous -> free reshape
    c_t = C.T                                  # (L, O), ~KB, one-time cost

    # Tile choice: aim for ~8+ grid steps once M is large (keeps both v7x TCs
    # busy and amortizes the ~0.35 us per-step pipeline overhead) while moving
    # >= ~1 MiB of X per step at the cap (tm=8192 -> 1 MiB X + 0.5 MiB out for
    # dim_latents=32/dim_obs=16, f32).  Never exceed M (rounded to sublanes).
    tm = max(1024, _round_up(pl.cdiv(M, 8), 128))
    tm = min(tm, tm_max, _round_up(M, 8))
    grid = (pl.cdiv(M, tm),)  # ragged last tile: Pallas masks OOB writes

    mean_flat = pl.pallas_call(
        _emission_mean_kernel,
        out_shape=jax.ShapeDtypeStruct((M, dim_obs), latents_last.dtype),
        grid_spec=pltpu.PrefetchScalarGridSpec(
            num_scalar_prefetch=0,
            grid=grid,
            in_specs=[
                # C^T: full block, constant index_map -> stays VMEM-resident.
                pl.BlockSpec((dim_latents, dim_obs), lambda i: (0, 0)),
                # X: one (tm, L) row tile per grid step (double-buffered).
                pl.BlockSpec((tm, dim_latents), lambda i: (i, 0)),
            ],
            # Output in the natural (M, dim_obs) layout: stores are
            # dim_obs-wide (masked), but this avoids a full extra HBM pass to
            # transpose the output in the wrapper.
            out_specs=pl.BlockSpec((tm, dim_obs), lambda i: (i, 0)),
        ),
        compiler_params=pltpu.CompilerParams(
            # Independent tiles along M: shard the grid across v7x's 2 TCs.
            dimension_semantics=("parallel",),
        ),
        cost_estimate=pl.CostEstimate(
            flops=2 * M * dim_obs * dim_latents,
            bytes_accessed=4 * (M * dim_latents + M * dim_obs
                                + dim_obs * dim_latents),
            transcendentals=0,
        ),
    )(c_t, x)

    return mean_flat.reshape(batch, particles, dim_obs)


def emission_forward(latents, C, R, *, expand_R=False):
    """Mirrors Emission.forward: returns (mean_fully_expanded, R).

    By default R is returned un-expanded; the (batch, particles, O, O)
    broadcast of the original module is pure HBM writeback with zero compute,
    so it is only materialized on request (expand_R=True).
    """
    latents_last = latents[-1]
    batch, particles, _ = latents_last.shape
    dim_obs = C.shape[0]

    mean_fully_expanded = emission_mean(latents_last, C)

    if expand_R:
        R_out = jnp.broadcast_to(R, (batch, particles, dim_obs, dim_obs))
    else:
        R_out = R

    # TODO(synk): torch.distributions.MultivariateNormal / aesmc BatchShapeMode
    # have no Pallas equivalent; we return the (loc, covariance) parameters.
    return mean_fully_expanded, R_out


if __name__ == "__main__":
    # Small shapes consistent with the module.
    batch = 2
    num_particles = 8
    dim_latents = 32
    dim_obs = 16

    key = jax.random.PRNGKey(0)
    k_c, k_r, k_x = jax.random.split(key, 3)

    # Deterministic parameters (C: (dim_obs, dim_latents), R: SPD (dim_obs, dim_obs)).
    C = jax.random.normal(k_c, (dim_obs, dim_latents), dtype=jnp.float32)
    A = jax.random.normal(k_r, (dim_obs, dim_obs), dtype=jnp.float32)
    R = A @ A.T + 1e-1 * jnp.eye(dim_obs, dtype=jnp.float32)

    latents_last = jax.random.normal(
        k_x, (batch, num_particles, dim_latents), dtype=jnp.float32
    )
    latents = [latents_last]  # module only uses latents[-1]

    # 1) Module forward at toy shapes (small-M fast path).
    mean, R_out = emission_forward(latents, C, R)
    jax.block_until_ready(mean)
    jax.block_until_ready(R_out)

    mean_ref = jnp.einsum("ol,bpl->bpo", C, latents_last)
    assert mean.shape == (batch, num_particles, dim_obs)
    assert jnp.allclose(mean, mean_ref, atol=1e-4, rtol=1e-4)

    # R is returned un-expanded; its lazy broadcast matches the torch expand.
    assert R_out.shape == (dim_obs, dim_obs)
    R_full = jnp.broadcast_to(R_out, (batch, num_particles, dim_obs, dim_obs))
    assert jnp.allclose(R_full[1, 3], R)

    # 2) Force the Pallas path at the tiny shapes (single-tile grid).
    mean_pallas_small = emission_mean(latents_last, C, force_pallas=True)
    jax.block_until_ready(mean_pallas_small)
    assert jnp.allclose(mean_pallas_small, mean_ref, atol=1e-4, rtol=1e-4)

    # 3) Larger M: multi-step pipelined grid (M = 8192 -> 8 steps of tm=1024).
    big_latents = jax.random.normal(
        jax.random.PRNGKey(1), (2, 4096, dim_latents), dtype=jnp.float32
    )
    big_mean = emission_mean(big_latents, C)
    jax.block_until_ready(big_mean)
    big_ref = jnp.einsum("ol,bpl->bpo", C, big_latents)
    assert big_mean.shape == (2, 4096, dim_obs)
    assert jnp.allclose(big_mean, big_ref, atol=1e-4, rtol=1e-4)

    # 4) Ragged M (M = 3000, tm = 1024): exercises the masked partial tile.
    ragged_latents = jax.random.normal(
        jax.random.PRNGKey(2), (3, 1000, dim_latents), dtype=jnp.float32
    )
    ragged_mean = emission_mean(ragged_latents, C)
    jax.block_until_ready(ragged_mean)
    ragged_ref = jnp.einsum("ol,bpl->bpo", C, ragged_latents)
    assert ragged_mean.shape == (3, 1000, dim_obs)
    assert jnp.allclose(ragged_mean, ragged_ref, atol=1e-4, rtol=1e-4)

    print("KERNEL_OK")
</pallas_src>

<mosaic_0001>
module attributes {stable_mosaic.version = 11 : i64} {
  func.func @_emission_mean_kernel(%arg0: i32, %arg1: memref<32x16xf32, #tpu.memory_space<vmem>>, %arg2: memref<16x32xf32, #tpu.memory_space<vmem>>, %arg3: memref<16x16xf32, #tpu.memory_space<vmem>>) attributes {dimension_semantics = [#tpu.dimension_semantics<parallel>], iteration_bounds = array<i64: 1>, scalar_prefetch = 0 : i64, scratch_operands = 0 : i64, tpu.core_type = #tpu.core_type<tc>, window_params = [{pipeline_mode = #tpu.pipeline_mode<synchronous>, transform_indices = @transform_0, window_bounds = array<i64: 32, 16>}, {transform_indices = @transform_1, window_bounds = array<i64: 16, 32>}, {transform_indices = @transform_2, window_bounds = array<i64: 16, 16>}]} {
    %c0 = arith.constant 0 : index
    %c0_0 = arith.constant 0 : index
    %0 = vector.load %arg2[%c0, %c0_0] : memref<16x32xf32, #tpu.memory_space<vmem>>, vector<16x32xf32>
    %c0_1 = arith.constant 0 : index
    %c0_2 = arith.constant 0 : index
    %1 = vector.load %arg1[%c0_1, %c0_2] : memref<32x16xf32, #tpu.memory_space<vmem>>, vector<32x16xf32>
    %cst = arith.constant dense<0.000000e+00> : vector<16x16xf32>
    %2 = tpu.matmul %0, %1, %cst {dimension_numbers = #tpu.dot_dimension_numbers<[1], [0], [0], [1], [0, 0, 1, 1], [], []>} : vector<16x32xf32>, vector<32x16xf32>, vector<16x16xf32> -> vector<16x16xf32>
    %c0_3 = arith.constant 0 : index
    %c0_4 = arith.constant 0 : index
    %3 = vector.load %arg3[%c0_3, %c0_4] : memref<16x16xf32, #tpu.memory_space<vmem>>, vector<16x16xf32>
    tpu.vector_store %arg3[%c0_3, %c0_4], %2 {strides = array<i32>} : memref<16x16xf32, #tpu.memory_space<vmem>>, vector<16x16xf32>,
    return
  }
  func.func @transform_0(%arg0: i32) -> (i32, i32) {
    %c0_i32 = arith.constant 0 : i32
    %c0_i32_0 = arith.constant 0 : i32
    %c0_i32_1 = arith.constant 0 : i32
    return %c0_i32, %c0_i32_0 : i32, i32
  }
  func.func @transform_1(%arg0: i32) -> (i32, i32) {
    %c0_i32 = arith.constant 0 : i32
    %c0_i32_0 = arith.constant 0 : i32
    return %arg0, %c0_i32 : i32, i32
  }
  func.func @transform_2(%arg0: i32) -> (i32, i32) {
    %c0_i32 = arith.constant 0 : i32
    %c0_i32_0 = arith.constant 0 : i32
    return %arg0, %c0_i32 : i32, i32
  }
}

</mosaic_0001>

<llo_original>
// kernel: tpu_custom_call.1
$region0: #{tpu_custom_call.1}
  #allocation0 [shape = 'u32[]', space=smem, size = 0x4, offset = 0x4, fixed_abs, tag = 'smem constant byte address 0x4 - core index']
  #allocation1 [shape = 'u32[72,128]{1,0:T(1,128)}', space=vmem, size = 0x9000, scoped, tag = 'internal scratch']
  %s0 = inlined_call_operand.vmem [shape: f32[32,16], index: 0, kind: input, shape index: {}]
  %s1 = inlined_call_operand.vmem [shape: f32[16,32], index: 1, kind: input, shape index: {}]
  %s2 = inlined_call_operand.hbm [shape: f32[16,16], index: 2, kind: output, shape index: {}]
  %s3 = sld [smem:[#allocation0]]
  $region18: #{tpu_custom_call.1} parent=0
    _
  %s5 = ssub.s32 1, %s3
  %s6 = scalar_select 0, %s5, %s3
  $region1: #{tpu_custom_call.1} parent=0
    #allocation2 [shape = 'u8[8192]{0}', space=vmem, size = 0x2000, scoped, tag = 'output window, operand 0, single buffered']
    #allocation3 [shape = 's32[1]{0}', space=sflag, size = 0x4, scoped, tag = 'scoped memory for tpu_custom_call.1']
    %7 = vsyncpa [#allocation3], 0
    // Predicated region
    $region2: #{tpu_custom_call.1} parent=1 // pred_check
      _
    $region3: #{tpu_custom_call.1} parent=1 // pred_check_branch
      %9 = sbr.rel (0) target = $region5
    $region4: #{tpu_custom_call.1} parent=1 // pred_region
      _
    $region5: #{tpu_custom_call.1} parent=1 // pred_fallthru
      _
    // Predicated region
    $region6: #{tpu_custom_call.1} parent=1 // pred_check
      _
    $region7: #{tpu_custom_call.1} parent=1 // pred_check_branch
      %11 = sbr.rel (0) target = $region9
    $region8: #{tpu_custom_call.1} parent=1 // pred_region
      _
    $region9: #{tpu_custom_call.1} parent=1 // pred_fallthru
      _
    %v12 = vld [vmem:[%s1] sm:$0xff]
    %v13 = vld [vmem:[%s1 + $0x8] sm:$0xff]
    %v14 = vld [vmem:[%s0] sm:$0xff]
    %v15 = vld [vmem:[%s0 + $0x8] sm:$0xff]
    %v16 = vld [vmem:[%s0 + $0x10] sm:$0xff]
    %v17 = vld [vmem:[%s0 + $0x18] sm:$0xff]
    %vm18 = vcmask 261120
    %v20 = vsel %vm18, %v12, 0
    %v23 = vsel %vm18, %v13, 0
    %25 = vmatpush.msra.mxu0 0.0
    %26 = vmatpush.msra.mxu0 0.0
    %27 = vmatpush.msra.mxu0 0.0
    %28 = vmatpush.msra.mxu0 0.0
    %29 = vmatpush.msra.mxu0 0.0
    %30 = vmatpush.msra.mxu0 0.0
    %31 = vmatpush.msra.mxu0 0.0
    %32 = vmatpush.msra.mxu0 0.0
    %33 = vmatpush.msra.mxu0 0.0
    %34 = vmatpush.msra.mxu0 0.0
    %35 = vmatpush.msra.mxu0 0.0
    %36 = vmatpush.msra.mxu0 0.0
    %37 = vmatpush.msra.mxu0 %v17
    %38 = vmatpush.msra.mxu0 %v16
    %39 = vmatpush.msra.mxu0 %v15
    %40 = vmatpush.msra.mxu0 %v14
    %41 = vmatmul.f32.gmra.mxu0 %v20
    %v42 = vpop.f32.mrf.mxu0
    %v43 = vadd.f32 0.0, %v42
    %44 = vmatmul.f32.gmra.mxu0 %v23
    %v45 = vpop.f32.mrf.mxu0
    %v46 = vadd.f32 0.0, %v45
    %47 = vdwg.mxu0
    %vm48 = vcmask 130048
    %49 = vst.msk [vmem:[#allocation2] sm:$0xff] %vm48, %v43
    %50 = vst.msk [vmem:[#allocation2 + $0x8] sm:$0xff] %vm48, %v46
    // Predicated region
    $region10: #{tpu_custom_call.1} parent=1 // pred_check
      _
    $region11: #{tpu_custom_call.1} parent=1 // pred_check_branch
      %52 = sbr.rel (0) target = $region13
    $region12: #{tpu_custom_call.1} parent=1 // pred_region
      %54 = vsyncadd [#allocation3], 0
      %s55 = sshll.u32 [#allocation2], 4
      %s56 = int_to_ptr.vmem [resolvable:$true] %s55
      %s57 = sshll.u32 %s2, 4
      %s58 = int_to_ptr.hbm [resolvable:$true] %s57
      %63 = dma.vmem_to_hbm [thread:$0]  %s56, 256, %s58, [#allocation3], 128, 128, 8
    $region13: #{tpu_custom_call.1} parent=1 // pred_fallthru
      _
    // Predicated region
    $region14: #{tpu_custom_call.1} parent=1 // pred_check
      _
    $region15: #{tpu_custom_call.1} parent=1 // pred_check_branch
      %65 = sbr.rel (0) target = $region17
    $region16: #{tpu_custom_call.1} parent=1 // pred_region
      %67 = dma.done [#allocation3], 256
    $region17: #{tpu_custom_call.1} parent=1 // pred_fallthru
      _
    %68 = vsyncpa [#allocation3], 1

</llo_original>
